<compile_context>
chip_gen: v7x
topology: tpu7x:2x2x1
jax: 0.10.0
libtpu: 0.0.40
codegen_flags: <defaults>
</compile_context>

<pallas_src>
import functools

import jax
import jax.numpy as jnp
from jax.experimental import pallas as pl
from jax.experimental.pallas import tpu as pltpu

_IGNORE_INDEX = -1
_MAX_TILE_N = 2048  # tokens per grid step (multiple of 128)


def _round_up(x, m):
    return ((x + m - 1) // m) * m


def _masked_nll_terms(x, labels, ignore_index):
    """x: [C, N] f32 (classes on sublanes), labels: [1, N] int32.

    Returns (sum over valid columns of -log_softmax(x)[label], #valid cols).
    """
    c, n = x.shape
    # numerically stable log-softmax along the class (sublane) axis
    m = jnp.max(x, axis=0, keepdims=True)                              # [1, N]
    lse = m + jnp.log(jnp.sum(jnp.exp(x - m), axis=0, keepdims=True))  # [1, N]
    logp = x - lse                                                     # [C, N]
    # gather logp[label_j, j] via one-hot compare (no dynamic gather on TPU)
    row = jax.lax.broadcasted_iota(jnp.int32, (c, n), 0)
    picked = jnp.sum(jnp.where(row == labels, logp, 0.0),
                     axis=0, keepdims=True)                            # [1, N]
    valid = labels != ignore_index
    nll_sum = jnp.sum(jnp.where(valid, -picked, 0.0))
    count = jnp.sum(valid.astype(jnp.float32))
    return nll_sum, count


def _fused_loss_kernel(wl_ref, wlab_ref, lg_ref, y_ref, out_ref, acc_ref, *,
                       ignore_index):
    i = pl.program_id(0)

    @pl.when(i == 0)
    def _init():
        acc_ref[0] = 0.0
        acc_ref[1] = 0.0

    # --- masked tag NLL for this tile of tokens ---
    tag_sum, tag_cnt = _masked_nll_terms(
        wl_ref[...].astype(jnp.float32), wlab_ref[...], ignore_index)
    acc_ref[0] += tag_sum
    acc_ref[1] += tag_cnt

    # --- finalize on last step: CE over the (small, whole) class logits ---
    @pl.when(i == pl.num_programs(0) - 1)
    def _fin():
        ce_sum, ce_cnt = _masked_nll_terms(
            lg_ref[...].astype(jnp.float32), y_ref[...], ignore_index)
        # NOTE: if every label equals ignore_index the division yields
        # inf/nan, matching the PyTorch semantics.
        out_ref[0] = ce_sum / ce_cnt + acc_ref[0] / acc_ref[1]


def sentiment_loss(words_logits, words_label, logits, y):
    """Pallas equivalent of SentimentLoss.forward.

    Args:
        words_logits: [B*T, n_tag] float
        words_label:  [B, T] int (-1 marks ignored tokens)
        logits:       [B, n_class] float
        y:            [B] int (all >= 0)
    Returns: scalar total loss (float32)
    """
    n_tokens, n_tag = words_logits.shape
    b, n_class = logits.shape

    # Lane-dense layout: classes on sublanes, examples on lanes.
    wl_t = jnp.transpose(words_logits)                    # [n_tag, N]
    wlab = words_label.reshape(1, -1).astype(jnp.int32)   # [1, N]
    lg_t = jnp.transpose(logits)                          # [n_class, B]
    y2d = y.reshape(1, -1).astype(jnp.int32)              # [1, B]

    tile_n = min(_MAX_TILE_N, _round_up(n_tokens, 128))
    n_pad = _round_up(n_tokens, tile_n)
    if n_pad != n_tokens:
        pad = n_pad - n_tokens
        wl_t = jnp.pad(wl_t, ((0, 0), (0, pad)))                       # zeros: safe
        wlab = jnp.pad(wlab, ((0, 0), (0, pad)),
                       constant_values=_IGNORE_INDEX)                  # masked out

    grid = (n_pad // tile_n,)
    out = pl.pallas_call(
        functools.partial(_fused_loss_kernel, ignore_index=_IGNORE_INDEX),
        out_shape=jax.ShapeDtypeStruct((1,), jnp.float32),
        grid_spec=pltpu.PrefetchScalarGridSpec(
            num_scalar_prefetch=0,
            grid=grid,
            in_specs=[
                pl.BlockSpec((n_tag, tile_n), lambda i: (0, i)),
                pl.BlockSpec((1, tile_n), lambda i: (0, i)),
                pl.BlockSpec((n_class, b), lambda i: (0, 0)),
                pl.BlockSpec((1, b), lambda i: (0, 0)),
            ],
            out_specs=pl.BlockSpec((1,), lambda i: (0,),
                                   memory_space=pltpu.MemorySpace.SMEM),
            scratch_shapes=[pltpu.SMEM((2,), jnp.float32)],
        ),
        compiler_params=pltpu.CompilerParams(
            dimension_semantics=("arbitrary",)),
    )(wl_t, wlab, lg_t, y2d)
    return out[0]


def _reference(words_logits, words_label, logits, y):
    """Pure-JAX reference matching the PyTorch semantics."""
    def log_softmax(x):
        m = jnp.max(x, axis=-1, keepdims=True)
        return x - (m + jnp.log(jnp.sum(jnp.exp(x - m), axis=-1, keepdims=True)))

    lp = log_softmax(logits.astype(jnp.float32))
    ce = -jnp.mean(jnp.take_along_axis(lp, y[:, None], axis=1))

    lbl = words_label.reshape(-1)
    mask = (lbl != -1).astype(jnp.float32)
    lpw = log_softmax(words_logits.astype(jnp.float32))
    picked = jnp.take_along_axis(lpw, jnp.clip(lbl, 0, None)[:, None], axis=1)[:, 0]
    tag = -jnp.sum(picked * mask) / jnp.sum(mask)
    return ce + tag


if __name__ == "__main__":
    # --- small case (matches the module's typical shapes) ---
    B, T = 2, 8
    n_sentiment_tag = 5
    n_class = 3

    key = jax.random.PRNGKey(0)
    k1, k2, k3, k4 = jax.random.split(key, 4)

    words_logits = jax.random.normal(k1, (B * T, n_sentiment_tag), dtype=jnp.float32)
    words_label = jax.random.randint(k2, (B, T), -1, n_sentiment_tag, dtype=jnp.int32)
    logits = jax.random.normal(k3, (B, n_class), dtype=jnp.float32)
    y = jax.random.randint(k4, (B,), 0, n_class, dtype=jnp.int32)

    total = jax.block_until_ready(sentiment_loss(words_logits, words_label, logits, y))
    ref = jax.block_until_ready(_reference(words_logits, words_label, logits, y))
    assert jnp.isfinite(total), "non-finite loss"
    assert jnp.allclose(total, ref, rtol=1e-5, atol=1e-5), (total, ref)

    # --- larger case to exercise the multi-tile grid + SMEM accumulator ---
    B2, T2 = 8, 384  # N = 3072 -> 2 grid steps of 2048 (with padding)
    k5, k6, k7, k8 = jax.random.split(jax.random.PRNGKey(1), 4)
    wl2 = jax.random.normal(k5, (B2 * T2, n_sentiment_tag), dtype=jnp.float32)
    lab2 = jax.random.randint(k6, (B2, T2), -1, n_sentiment_tag, dtype=jnp.int32)
    lg2 = jax.random.normal(k7, (B2, n_class), dtype=jnp.float32)
    y2 = jax.random.randint(k8, (B2,), 0, n_class, dtype=jnp.int32)

    total2 = jax.block_until_ready(sentiment_loss(wl2, lab2, lg2, y2))
    ref2 = jax.block_until_ready(_reference(wl2, lab2, lg2, y2))
    assert jnp.isfinite(total2), "non-finite loss (large case)"
    assert jnp.allclose(total2, ref2, rtol=1e-5, atol=1e-5), (total2, ref2)

    print("KERNEL_OK")
</pallas_src>

<mosaic_0001>
module attributes {stable_mosaic.version = 11 : i64} {
  func.func @_fused_loss_kernel(%arg0: i32, %arg1: memref<5x128xf32, #tpu.memory_space<vmem>>, %arg2: memref<1x128xi32, #tpu.memory_space<vmem>>, %arg3: memref<3x2xf32, #tpu.memory_space<vmem>>, %arg4: memref<1x2xi32, #tpu.memory_space<vmem>>, %arg5: memref<1xf32, #tpu.memory_space<smem>>, %arg6: memref<2xf32, #tpu.memory_space<smem>>) attributes {dimension_semantics = [#tpu.dimension_semantics<arbitrary>], iteration_bounds = array<i64: 1>, scalar_prefetch = 0 : i64, scratch_operands = 1 : i64, tpu.core_type = #tpu.core_type<tc>, window_params = [{transform_indices = @transform_0, window_bounds = array<i64: 5, 128>}, {transform_indices = @transform_1, window_bounds = array<i64: 1, 128>}, {pipeline_mode = #tpu.pipeline_mode<synchronous>, transform_indices = @transform_2, window_bounds = array<i64: 3, 2>}, {pipeline_mode = #tpu.pipeline_mode<synchronous>, transform_indices = @transform_3, window_bounds = array<i64: 1, 2>}, {transform_indices = @transform_4, window_bounds = array<i64: 1>}]} {
    %c0_i32 = arith.constant 0 : i32
    %0 = arith.cmpi eq, %arg0, %c0_i32 : i32
    %1 = arith.extui %0 : i1 to i32
    %c0_i32_0 = arith.constant 0 : i32
    %2 = arith.cmpi ne, %1, %c0_i32_0 : i32
    scf.if %2 {
      %cst_16 = arith.constant 0.000000e+00 : f32
      %c0_17 = arith.constant 0 : index
      %48 = memref.load %arg6[%c0_17] : memref<2xf32, #tpu.memory_space<smem>>
      memref.store %cst_16, %arg6[%c0_17] : memref<2xf32, #tpu.memory_space<smem>>
      %cst_18 = arith.constant 0.000000e+00 : f32
      %c1_19 = arith.constant 1 : index
      %49 = memref.load %arg6[%c1_19] : memref<2xf32, #tpu.memory_space<smem>>
      memref.store %cst_18, %arg6[%c1_19] : memref<2xf32, #tpu.memory_space<smem>>
    } else {
    }
    %c0 = arith.constant 0 : index
    %c0_1 = arith.constant 0 : index
    %3 = vector.load %arg1[%c0, %c0_1] : memref<5x128xf32, #tpu.memory_space<vmem>>, vector<5x128xf32>
    %c0_2 = arith.constant 0 : index
    %c0_3 = arith.constant 0 : index
    %4 = vector.load %arg2[%c0_2, %c0_3] : memref<1x128xi32, #tpu.memory_space<vmem>>, vector<1x128xi32>
    %cst = arith.constant dense<0xFF800000> : vector<128xf32>
    %5 = vector.multi_reduction <maximumf>, %3, %cst [0] : vector<5x128xf32> to vector<128xf32>
    %6 = vector.shape_cast %5 : vector<128xf32> to vector<1x128xf32>
    %7 = vector.broadcast %6 : vector<1x128xf32> to vector<5x128xf32>
    %8 = arith.subf %3, %7 : vector<5x128xf32>
    %9 = math.exp %8 : vector<5x128xf32>
    %cst_4 = arith.constant dense<0.000000e+00> : vector<128xf32>
    %10 = vector.multi_reduction <add>, %9, %cst_4 [0] : vector<5x128xf32> to vector<128xf32>
    %11 = vector.shape_cast %10 : vector<128xf32> to vector<1x128xf32>
    %12 = math.log %11 : vector<1x128xf32>
    %13 = arith.addf %6, %12 : vector<1x128xf32>
    %14 = vector.broadcast %13 : vector<1x128xf32> to vector<5x128xf32>
    %15 = arith.subf %3, %14 : vector<5x128xf32>
    %16 = tpu.iota {dimensions = array<i32: 0>} : vector<5x128xi32>
    %17 = vector.broadcast %4 : vector<1x128xi32> to vector<5x128xi32>
    %18 = arith.cmpi eq, %16, %17 : vector<5x128xi32>
    %cst_5 = arith.constant 0.000000e+00 : f32
    %19 = vector.broadcast %cst_5 : f32 to vector<5x128xf32>
    %20 = arith.select %18, %15, %19 : vector<5x128xi1>, vector<5x128xf32>
    %cst_6 = arith.constant dense<0.000000e+00> : vector<128xf32>
    %21 = vector.multi_reduction <add>, %20, %cst_6 [0] : vector<5x128xf32> to vector<128xf32>
    %22 = vector.shape_cast %21 : vector<128xf32> to vector<1x128xf32>
    %c-1_i32 = arith.constant -1 : i32
    %23 = vector.broadcast %c-1_i32 : i32 to vector<1x128xi32>
    %24 = arith.cmpi ne, %4, %23 : vector<1x128xi32>
    %cst_7 = arith.constant 0.000000e+00 : f32
    %25 = vector.broadcast %cst_7 : f32 to vector<1x128xf32>
    %26 = arith.subf %25, %22 : vector<1x128xf32>
    %cst_8 = arith.constant 0.000000e+00 : f32
    %27 = vector.broadcast %cst_8 : f32 to vector<1x128xf32>
    %28 = arith.select %24, %26, %27 : vector<1x128xi1>, vector<1x128xf32>
    %29 = vector.shape_cast %28 : vector<1x128xf32> to vector<1x1x128xf32>
    %cst_9 = arith.constant dense<0.000000e+00> : vector<1xf32>
    %30 = vector.multi_reduction <add>, %29, %cst_9 [1, 2] : vector<1x1x128xf32> to vector<1xf32>
    %31 = vector.shape_cast %30 : vector<1xf32> to vector<1x1x1xf32>
    %32 = vector.extract %31[0, 0, 0] : f32 from vector<1x1x1xf32>
    %33 = arith.extui %24 : vector<1x128xi1> to vector<1x128xi32>
    %34 = arith.sitofp %33 : vector<1x128xi32> to vector<1x128xf32>
    %35 = vector.shape_cast %34 : vector<1x128xf32> to vector<1x1x128xf32>
    %cst_10 = arith.constant dense<0.000000e+00> : vector<1xf32>
    %36 = vector.multi_reduction <add>, %35, %cst_10 [1, 2] : vector<1x1x128xf32> to vector<1xf32>
    %37 = vector.shape_cast %36 : vector<1xf32> to vector<1x1x1xf32>
    %38 = vector.extract %37[0, 0, 0] : f32 from vector<1x1x1xf32>
    %c0_11 = arith.constant 0 : index
    %39 = memref.load %arg6[%c0_11] : memref<2xf32, #tpu.memory_space<smem>>
    %40 = arith.addf %39, %32 : f32
    %c0_12 = arith.constant 0 : index
    %41 = memref.load %arg6[%c0_12] : memref<2xf32, #tpu.memory_space<smem>>
    memref.store %40, %arg6[%c0_12] : memref<2xf32, #tpu.memory_space<smem>>
    %c1 = arith.constant 1 : index
    %42 = memref.load %arg6[%c1] : memref<2xf32, #tpu.memory_space<smem>>
    %43 = arith.addf %42, %38 : f32
    %c1_13 = arith.constant 1 : index
    %44 = memref.load %arg6[%c1_13] : memref<2xf32, #tpu.memory_space<smem>>
    memref.store %43, %arg6[%c1_13] : memref<2xf32, #tpu.memory_space<smem>>
    %c0_i32_14 = arith.constant 0 : i32
    %45 = arith.cmpi eq, %arg0, %c0_i32_14 : i32
    %46 = arith.extui %45 : i1 to i32
    %c0_i32_15 = arith.constant 0 : i32
    %47 = arith.cmpi ne, %46, %c0_i32_15 : i32
    scf.if %47 {
      %c0_16 = arith.constant 0 : index
      %c0_17 = arith.constant 0 : index
      %48 = vector.load %arg3[%c0_16, %c0_17] : memref<3x2xf32, #tpu.memory_space<vmem>>, vector<3x2xf32>
      %c0_18 = arith.constant 0 : index
      %c0_19 = arith.constant 0 : index
      %49 = vector.load %arg4[%c0_18, %c0_19] : memref<1x2xi32, #tpu.memory_space<vmem>>, vector<1x2xi32>
      %cst_20 = arith.constant dense<0xFF800000> : vector<2xf32>
      %50 = vector.multi_reduction <maximumf>, %48, %cst_20 [0] : vector<3x2xf32> to vector<2xf32>
      %51 = vector.shape_cast %50 : vector<2xf32> to vector<1x2xf32>
      %52 = vector.broadcast %51 : vector<1x2xf32> to vector<3x2xf32>
      %53 = arith.subf %48, %52 : vector<3x2xf32>
      %54 = math.exp %53 : vector<3x2xf32>
      %cst_21 = arith.constant dense<0.000000e+00> : vector<2xf32>
      %55 = vector.multi_reduction <add>, %54, %cst_21 [0] : vector<3x2xf32> to vector<2xf32>
      %56 = vector.shape_cast %55 : vector<2xf32> to vector<1x2xf32>
      %57 = math.log %56 : vector<1x2xf32>
      %58 = arith.addf %51, %57 : vector<1x2xf32>
      %59 = vector.broadcast %58 : vector<1x2xf32> to vector<3x2xf32>
      %60 = arith.subf %48, %59 : vector<3x2xf32>
      %61 = tpu.iota {dimensions = array<i32: 0>} : vector<3x2xi32>
      %62 = vector.broadcast %49 : vector<1x2xi32> to vector<3x2xi32>
      %63 = arith.cmpi eq, %61, %62 : vector<3x2xi32>
      %cst_22 = arith.constant 0.000000e+00 : f32
      %64 = vector.broadcast %cst_22 : f32 to vector<3x2xf32>
      %65 = arith.select %63, %60, %64 : vector<3x2xi1>, vector<3x2xf32>
      %cst_23 = arith.constant dense<0.000000e+00> : vector<2xf32>
      %66 = vector.multi_reduction <add>, %65, %cst_23 [0] : vector<3x2xf32> to vector<2xf32>
      %67 = vector.shape_cast %66 : vector<2xf32> to vector<1x2xf32>
      %c-1_i32_24 = arith.constant -1 : i32
      %68 = vector.broadcast %c-1_i32_24 : i32 to vector<1x2xi32>
      %69 = arith.cmpi ne, %49, %68 : vector<1x2xi32>
      %cst_25 = arith.constant 0.000000e+00 : f32
      %70 = vector.broadcast %cst_25 : f32 to vector<1x2xf32>
      %71 = arith.subf %70, %67 : vector<1x2xf32>
      %cst_26 = arith.constant 0.000000e+00 : f32
      %72 = vector.broadcast %cst_26 : f32 to vector<1x2xf32>
      %73 = arith.select %69, %71, %72 : vector<1x2xi1>, vector<1x2xf32>
      %74 = vector.shape_cast %73 : vector<1x2xf32> to vector<1x1x2xf32>
      %cst_27 = arith.constant dense<0.000000e+00> : vector<1xf32>
      %75 = vector.multi_reduction <add>, %74, %cst_27 [1, 2] : vector<1x1x2xf32> to vector<1xf32>
      %76 = vector.shape_cast %75 : vector<1xf32> to vector<1x1x1xf32>
      %77 = vector.extract %76[0, 0, 0] : f32 from vector<1x1x1xf32>
      %78 = arith.extui %69 : vector<1x2xi1> to vector<1x2xi32>
      %79 = arith.sitofp %78 : vector<1x2xi32> to vector<1x2xf32>
      %80 = vector.shape_cast %79 : vector<1x2xf32> to vector<1x1x2xf32>
      %cst_28 = arith.constant dense<0.000000e+00> : vector<1xf32>
      %81 = vector.multi_reduction <add>, %80, %cst_28 [1, 2] : vector<1x1x2xf32> to vector<1xf32>
      %82 = vector.shape_cast %81 : vector<1xf32> to vector<1x1x1xf32>
      %83 = vector.extract %82[0, 0, 0] : f32 from vector<1x1x1xf32>
      %84 = arith.divf %77, %83 : f32
      %c0_29 = arith.constant 0 : index
      %85 = memref.load %arg6[%c0_29] : memref<2xf32, #tpu.memory_space<smem>>
      %c1_30 = arith.constant 1 : index
      %86 = memref.load %arg6[%c1_30] : memref<2xf32, #tpu.memory_space<smem>>
      %87 = arith.divf %85, %86 : f32
      %88 = arith.addf %84, %87 : f32
      %c0_31 = arith.constant 0 : index
      %89 = memref.load %arg5[%c0_31] : memref<1xf32, #tpu.memory_space<smem>>
      memref.store %88, %arg5[%c0_31] : memref<1xf32, #tpu.memory_space<smem>>
    } else {
    }
    return
  }
  func.func @transform_0(%arg0: i32) -> (i32, i32) {
    %c0_i32 = arith.constant 0 : i32
    %c0_i32_0 = arith.constant 0 : i32
    return %c0_i32, %arg0 : i32, i32
  }
  func.func @transform_1(%arg0: i32) -> (i32, i32) {
    %c0_i32 = arith.constant 0 : i32
    %c0_i32_0 = arith.constant 0 : i32
    return %c0_i32, %arg0 : i32, i32
  }
  func.func @transform_2(%arg0: i32) -> (i32, i32) {
    %c0_i32 = arith.constant 0 : i32
    %c0_i32_0 = arith.constant 0 : i32
    %c0_i32_1 = arith.constant 0 : i32
    return %c0_i32, %c0_i32_0 : i32, i32
  }
  func.func @transform_3(%arg0: i32) -> (i32, i32) {
    %c0_i32 = arith.constant 0 : i32
    %c0_i32_0 = arith.constant 0 : i32
    %c0_i32_1 = arith.constant 0 : i32
    return %c0_i32, %c0_i32_0 : i32, i32
  }
  func.func @transform_4(%arg0: i32) -> i32 {
    %c0_i32 = arith.constant 0 : i32
    %c0_i32_0 = arith.constant 0 : i32
    return %c0_i32 : i32
  }
}

</mosaic_0001>

<llo_original>
// kernel: tpu_custom_call.1
$region0: #{tpu_custom_call.1}
  #allocation0 [shape = 'u32[]', space=smem, size = 0x4, offset = 0x4, fixed_abs, tag = 'smem constant byte address 0x4 - core index']
  #allocation1 [shape = 'u32[144,128]{1,0:T(1,128)}', space=vmem, size = 0x12000, scoped, tag = 'internal scratch']
  #allocation2 [shape = 'f32[2]{0:T(128)}', space=smem, size = 0x200, scoped, tag = 'scratch operand']
  %s0 = inlined_call_operand.hbm [shape: f32[5,128], index: 0, kind: input, shape index: {}]
  %s1 = inlined_call_operand.vmem [shape: s32[1,128], index: 1, kind: input, shape index: {}]
  %s2 = inlined_call_operand.vmem [shape: f32[3,2], index: 2, kind: input, shape index: {}]
  %s3 = inlined_call_operand.vmem [shape: s32[1,2], index: 3, kind: input, shape index: {}]
  %s4 = inlined_call_operand.hbm [shape: f32[1], index: 4, kind: output, shape index: {}]
  %s5 = sld [smem:[#allocation0]]
  $region38: #{tpu_custom_call.1} parent=0
    _
  %s7 = ssub.s32 1, %s5
  %s8 = scalar_select 0, %s7, %s5
  $region1: #{tpu_custom_call.1} parent=0
    #allocation3 [shape = 'u8[4096]{0}', space=vmem, size = 0x1000, scoped, tag = 'input window, operand 0, single buffered']
    #allocation4 [shape = 's32[1]{0}', space=sflag, size = 0x4, scoped, tag = 'scoped memory for tpu_custom_call.1']
    #allocation5 [shape = 's32[1]{0}', space=sflag, size = 0x4, scoped, tag = 'scoped memory for tpu_custom_call.1']
    #allocation6 [shape = 'u8[512]{0}', space=smem, size = 0x200, scoped, tag = 'output window, operand 0, single buffered']
    %9 = vsyncpa [#allocation4], 0
    %10 = vsyncpa [#allocation5], 0
    // Predicated region
    $region2: #{tpu_custom_call.1} parent=1 // pred_check
      _
    $region3: #{tpu_custom_call.1} parent=1 // pred_check_branch
      %12 = sbr.rel (0) target = $region5
    $region4: #{tpu_custom_call.1} parent=1 // pred_region
      %s14 = ssub.s32 128, 128
      %15 = vsyncadd [#allocation4], %s14
      %s17 = sshll.u32 [#allocation3], 4
      %s18 = int_to_ptr.vmem [resolvable:$true] %s17
      %20 = dma.hbm_to_vmem [thread:$0]  %s0, 128, %s18, [#allocation4]
    $region5: #{tpu_custom_call.1} parent=1 // pred_fallthru
      _
    // Predicated region
    $region6: #{tpu_custom_call.1} parent=1 // pred_check
      _
    $region7: #{tpu_custom_call.1} parent=1 // pred_check_branch
      %22 = sbr.rel (0) target = $region9
    $region8: #{tpu_custom_call.1} parent=1 // pred_region
      _
    $region9: #{tpu_custom_call.1} parent=1 // pred_fallthru
      _
    // Predicated region
    $region10: #{tpu_custom_call.1} parent=1 // pred_check
      _
    $region11: #{tpu_custom_call.1} parent=1 // pred_check_branch
      %24 = sbr.rel (0) target = $region13
    $region12: #{tpu_custom_call.1} parent=1 // pred_region
      _
    $region13: #{tpu_custom_call.1} parent=1 // pred_fallthru
      _
    // Predicated region
    $region14: #{tpu_custom_call.1} parent=1 // pred_check
      _
    $region15: #{tpu_custom_call.1} parent=1 // pred_check_branch
      %26 = sbr.rel (0) target = $region17
    $region16: #{tpu_custom_call.1} parent=1 // pred_region
      _
    $region17: #{tpu_custom_call.1} parent=1 // pred_fallthru
      _
    // Predicated region
    $region18: #{tpu_custom_call.1} parent=1 // pred_check
      _
    $region19: #{tpu_custom_call.1} parent=1 // pred_check_branch
      %28 = sbr.rel (0) target = $region21
    $region20: #{tpu_custom_call.1} parent=1 // pred_region
      %29 = dma.done [#allocation4], 128
    $region21: #{tpu_custom_call.1} parent=1 // pred_fallthru
      _
    %p30 = scmp.eq.s32.totalorder 0, 0
    // Predicated region
    $region22: #{tpu_custom_call.1} parent=1 // pred_check
      %p31 = pneg %p30
    $region23: #{tpu_custom_call.1} parent=1 // pred_check_branch
      %33 = sbr.rel (%p31) target = $region25
    $region24: #{tpu_custom_call.1} parent=1 // pred_region
      %s34 = scalar_lea.smem [#allocation2], 0
      %35 = sst [smem:[%s34]] 0.0
      %s36 = scalar_lea.smem [#allocation2], 1
      %37 = sst [smem:[%s36]] 0.0
    $region25: #{tpu_custom_call.1} parent=1 // pred_fallthru
      _
    %v38 = vld [vmem:[#allocation3] sm:$0x1f]
    %v39 = vld [vmem:[%s1] sm:$0x1]
    %vm40 = vcmask 1044480
    %v41 = vsel %vm40, %v38, -inf
    %v42 = vrot.slane %v41, 4
    %v43 = vmax.f32 %v41, %v42
    %v44 = vrot.slane %v43, 2
    %v45 = vmax.f32 %v43, %v44
    %v46 = vrot.slane %v45, 1
    %v47 = vmax.f32 %v45, %v46
    %v48 = vsub.f32 %v38, %v47
    %v49 = vmul.f32 %v48, 1.442695
    %v50 = vpow.pop %v49
    %v51 = vsel %vm40, %v50, 0.0
    %v52 = vrot.slane %v51, 4
    %v53 = vadd.f32 %v51, %v52
    %v54 = vrot.slane %v53, 2
    %v55 = vadd.f32 %v53, %v54
    %v56 = vrot.slane %v55, 1
    %v57 = vadd.f32 %v55, %v56
    %v58 = vlog2.pop %v57
    %v59 = vmul.f32 %v58, 0.6931472
    %v60 = vadd.f32 %v47, %v59
    %v61 = vsub.f32 %v38, %v60
    %v62 = vlaneseq
    %v63 = vshrl.u32 %v62, 7
    %v64 = vlaneseq
    %v65 = vshrl.u32 %v64, 7
    %v66 = vsub.s32 0, %v65
    %v67 = vrot.slane %v39, %v66
    %vm68 = vcmp.eq.s32.totalorder %v63, %v67
    %v69 = vsel %vm68, %v61, 0.0
    %v70 = vsel %vm40, %v69, 0.0
    %v71 = vrot.slane %v70, 4
    %v72 = vadd.f32 %v70, %v71
    %v73 = vrot.slane %v72, 2
    %v74 = vadd.f32 %v72, %v73
    %v75 = vrot.slane %v74, 1
    %v76 = vadd.f32 %v74, %v75
    %vm77 = vcmp.ne.s32.totalorder %v39, 4294967295
    %v78 = vsub.f32 0.0, %v76
    %v79 = vsel %vm77, %v78, 0.0
    %vm80 = vcmask 1040384
    %v81 = vsel %vm80, %v79, 0.0
    %82 = vadd.xlane.f32.xlu0 %v81
    %v83 = vpop.xlane.xlu0 %82
    %v84 = vrot.slane %v83, 4
    %v85 = vadd.f32 %v83, %v84
    %v86 = vrot.slane %v85, 2
    %v87 = vadd.f32 %v85, %v86
    %v88 = vrot.slane %v87, 1
    %v89 = vadd.f32 %v87, %v88
    %s90 = vtos %v89
    %v91 = vsel %vm77, 1, 0
    %v92 = vcvt.s32.f32 %v91
    %v93 = vsel %vm80, %v92, 0.0
    %94 = vadd.xlane.f32.xlu0 %v93
    %v95 = vpop.xlane.xlu0 %94
    %v96 = vrot.slane %v95, 4
    %v97 = vadd.f32 %v95, %v96
    %v98 = vrot.slane %v97, 2
    %v99 = vadd.f32 %v97, %v98
    %v100 = vrot.slane %v99, 1
    %v101 = vadd.f32 %v99, %v100
    %s102 = vtos %v101
    %s103 = sld [smem:[#allocation2]]
    %s104 = sadd.f32 %s103, %s90
    %s105 = scalar_lea.smem [#allocation2], 0
    %106 = sst [smem:[%s105]] %s104
    %s107 = sld [smem:[#allocation2 + $0x1]]
    %s108 = sadd.f32 %s107, %s102
    %s109 = scalar_lea.smem [#allocation2], 1
    %110 = sst [smem:[%s109]] %s108
    // Predicated region
    $region26: #{tpu_custom_call.1} parent=1 // pred_check
      %p111 = pneg %p30
    $region27: #{tpu_custom_call.1} parent=1 // pred_check_branch
      %113 = sbr.rel (%p111) target = $region29
    $region28: #{tpu_custom_call.1} parent=1 // pred_region
      %v114 = vld [vmem:[%s2] sm:$0x7]
      %v115 = vld [vmem:[%s3] sm:$0x1]
      %vm116 = vcmask 10240
      %v117 = vsel %vm116, %v114, -inf
      %v118 = vrot.slane %v117, 4
      %v119 = vmax.f32 %v117, %v118
      %v120 = vrot.slane %v119, 2
      %v121 = vmax.f32 %v119, %v120
      %v122 = vrot.slane %v121, 1
      %v123 = vmax.f32 %v121, %v122
      %v124 = vsub.f32 %v114, %v123
      %v125 = vmul.f32 %v124, 1.442695
      %v126 = vpow.pop %v125
      %v127 = vsel %vm116, %v126, 0.0
      %v128 = vrot.slane %v127, 4
      %v129 = vadd.f32 %v127, %v128
      %v130 = vrot.slane %v129, 2
      %v131 = vadd.f32 %v129, %v130
      %v132 = vrot.slane %v131, 1
      %v133 = vadd.f32 %v131, %v132
      %v134 = vlog2.pop %v133
      %v135 = vmul.f32 %v134, 0.6931472
      %v136 = vadd.f32 %v123, %v135
      %v137 = vsub.f32 %v114, %v136
      %v138 = vlaneseq
      %v139 = vshrl.u32 %v138, 7
      %v140 = vsub.s32 0, %v139
      %v141 = vrot.slane %v115, %v140
      %vm142 = vcmp.eq.s32.totalorder %v63, %v141
      %v143 = vsel %vm142, %v137, 0.0
      %v144 = vsel %vm116, %v143, 0.0
      %v145 = vrot.slane %v144, 4
      %v146 = vadd.f32 %v144, %v145
      %v147 = vrot.slane %v146, 2
      %v148 = vadd.f32 %v146, %v147
      %v149 = vrot.slane %v148, 1
      %v150 = vadd.f32 %v148, %v149
      %vm151 = vcmp.ne.s32.totalorder %v115, 4294967295
      %v152 = vsub.f32 0.0, %v150
      %v153 = vsel %vm151, %v152, 0.0
      %vm154 = vcmask 8192
      %v155 = vsel %vm154, %v153, 0.0
      %156 = vadd.xlane.f32.xlu0 %v155
      %v157 = vpop.xlane.xlu0 %156
      %v158 = vrot.slane %v157, 4
      %v159 = vadd.f32 %v157, %v158
      %v160 = vrot.slane %v159, 2
      %v161 = vadd.f32 %v159, %v160
      %v162 = vrot.slane %v161, 1
      %v163 = vadd.f32 %v161, %v162
      %s164 = vtos %v163
      %v165 = vsel %vm151, 1, 0
      %v166 = vcvt.s32.f32 %v165
      %v167 = vsel %vm154, %v166, 0.0
      %168 = vadd.xlane.f32.xlu0 %v167
      %v169 = vpop.xlane.xlu0 %168
      %v170 = vrot.slane %v169, 4
      %v171 = vadd.f32 %v169, %v170
      %v172 = vrot.slane %v171, 2
      %v173 = vadd.f32 %v171, %v172
      %v174 = vrot.slane %v173, 1
      %v175 = vadd.f32 %v173, %v174
      %s176 = vtos %v175
      %v177 = vstv %s176
      %v178 = vrcp.pop %v177
      %s179 = vtos %v178
      %s180 = smul.f32 %s164, %s179
      %s181 = sld [smem:[#allocation2]]
      %s182 = sld [smem:[#allocation2 + $0x1]]
      %v183 = vstv %s182
      %v184 = vrcp.pop %v183
      %s185 = vtos %v184
      %s186 = smul.f32 %s181, %s185
      %s187 = sadd.f32 %s180, %s186
      %s188 = scalar_lea.smem [#allocation6], 0
      %189 = sst [smem:[%s188]] %s187
    $region29: #{tpu_custom_call.1} parent=1 // pred_fallthru
      _
    // Predicated region
    $region30: #{tpu_custom_call.1} parent=1 // pred_check
      _
    $region31: #{tpu_custom_call.1} parent=1 // pred_check_branch
      %191 = sbr.rel (0) target = $region33
    $region32: #{tpu_custom_call.1} parent=1 // pred_region
      %s193 = ssub.s32 16, 16
      %194 = vsyncadd [#allocation5], %s193
      %197 = dma.smem_to_hbm [#allocation6], 16, %s4, [#allocation5]
    $region33: #{tpu_custom_call.1} parent=1 // pred_fallthru
      _
    // Predicated region
    $region34: #{tpu_custom_call.1} parent=1 // pred_check
      _
    $region35: #{tpu_custom_call.1} parent=1 // pred_check_branch
      %199 = sbr.rel (0) target = $region37
    $region36: #{tpu_custom_call.1} parent=1 // pred_region
      %200 = dma.done [#allocation5], 16
    $region37: #{tpu_custom_call.1} parent=1 // pred_fallthru
      _
    %201 = sfence
    %202 = vsyncpa [#allocation4], 1
    %203 = vsyncpa [#allocation5], 1

</llo_original>
